<compile_context>
chip_gen: v7x
topology: tpu7x:2x2x1
jax: 0.10.0
libtpu: 0.0.40
codegen_flags: <defaults>
</compile_context>

<pallas_src>
import jax
import jax.numpy as jnp
from jax.experimental import pallas as pl
from jax.experimental.pallas import tpu as pltpu
import numpy as np


def dcm_forward_kernel(xq_ref, xtT_ref, out_ref, best_d_ref, best_i_ref):
    # xq_ref : (tile_n, dim+1)  query tile, rows [-2*q_i, 1]
    # xtT_ref: (dim+1, tile_m)  stored tile, cols [t_j ; ||t_j||^2]
    # out_ref: (tile_n, 1)      global argmin index (int32) for this query tile
    # best_d_ref: (tile_n, 1)   running min key across stored-point tiles (f32)
    # best_i_ref: (tile_n, 1)   running global argmin index (int32)
    k = pl.program_id(1)

    @pl.when(k == 0)
    def _():
        best_d_ref[...] = jnp.full(best_d_ref.shape, jnp.inf, dtype=jnp.float32)
        best_i_ref[...] = jnp.zeros(best_i_ref.shape, dtype=jnp.int32)

    # key[i, j] = ||t_j||^2 - 2 q_i . t_j  (= squared distance up to a per-row constant)
    key = jnp.dot(xq_ref[...], xtT_ref[...], preferred_element_type=jnp.float32)  # (tn, tm)

    tm = key.shape[1]
    col = jax.lax.broadcasted_iota(jnp.int32, (1, tm), 1)                 # (1, tm), broadcasts
    kmin = jnp.min(key, axis=-1, keepdims=True)                           # (tn, 1)
    # first-occurrence tie-break (matches torch / jnp argmin semantics)
    idx_local = jnp.min(jnp.where(key == kmin, col, tm), axis=-1, keepdims=True)  # (tn, 1) int32
    idx_global = idx_local + k * tm                                       # global column index

    better = kmin < best_d_ref[...]          # strict '<' keeps the earliest tile on ties
    best_i_ref[...] = jnp.where(better, idx_global, best_i_ref[...])
    best_d_ref[...] = jnp.where(better, kmin, best_d_ref[...])

    @pl.when(k == pl.num_programs(1) - 1)
    def _():
        out_ref[...] = best_i_ref[...]


def _round_up(a, b):
    return (a + b - 1) // b * b


def dcm_forward(x, x_train, y_train, *, tile_n=512, tile_m=1024, use_bf16=False,
                min_query_tiles=1):
    """Pallas TPU implementation of DCM.forward. Returns float32 labels, shape (N,).

    min_query_tiles: set to 2 on v7x so the "parallel" query-tile axis can shard
    across both TensorCores; leave at 1 on v5e/v6e to minimize xtT re-streaming.
    """
    N, dim = x.shape
    M, dim_t = x_train.shape
    assert dim == dim_t

    x = jnp.asarray(x, jnp.float32)
    x_train = jnp.asarray(x_train, jnp.float32)
    y_train = jnp.asarray(y_train, jnp.float32)

    # ---- tiling (respect the (8, 128) block constraints) ---------------------
    if min_query_tiles > 1 and N > 8:
        # Keep >= min_query_tiles query tiles (megacore sharding on v7x).
        tile_n = min(tile_n, _round_up((N + min_query_tiles - 1) // min_query_tiles, 8))

    if N <= tile_n:                      # single query tile: block == full array dims
        tile_n_eff, n_pad = N, N
    else:                                # sublane axis -> multiple of 8
        tile_n_eff = _round_up(min(tile_n, N), 8)
        n_pad = _round_up(N, tile_n_eff)

    if M <= tile_m:                      # single stored-point tile (loaded once)
        tile_m_eff, m_pad = M, M
    else:                                # lane axis -> multiple of 128
        tile_m_eff = _round_up(tile_m, 128)
        m_pad = _round_up(M, tile_m_eff)

    cdtype = jnp.bfloat16 if use_bf16 else jnp.float32

    # ---- hoisted, augmented operands (built once by XLA, not per grid step) ---
    # queries: rows [-2*x_i | 1]; padded rows are zeros (their results are sliced off)
    xq_aug = jnp.zeros((n_pad, dim + 1), jnp.float32)
    xq_aug = xq_aug.at[:N, :dim].set(-2.0 * x)
    xq_aug = xq_aug.at[:N, dim].set(1.0)
    xq_aug = xq_aug.astype(cdtype)

    # stored points (pre-transposed): columns [t_j ; ||t_j||^2];
    # padded columns get a huge norm so they can never win the argmin.
    xtT_aug = jnp.zeros((dim + 1, m_pad), jnp.float32)
    xtT_aug = xtT_aug.at[:dim, :M].set(x_train.T)
    xtT_aug = xtT_aug.at[dim, :M].set(jnp.sum(x_train * x_train, axis=-1))
    if m_pad > M:
        xtT_aug = xtT_aug.at[dim, M:].set(1e30)
    xtT_aug = xtT_aug.astype(cdtype)

    grid = (n_pad // tile_n_eff, m_pad // tile_m_eff)

    best_idx = pl.pallas_call(
        dcm_forward_kernel,
        out_shape=jax.ShapeDtypeStruct((n_pad, 1), jnp.int32),
        grid_spec=pltpu.PrefetchScalarGridSpec(
            num_scalar_prefetch=0,
            grid=grid,
            in_specs=[
                pl.BlockSpec((tile_n_eff, dim + 1), lambda i, k: (i, 0)),  # query tile (resident per i)
                pl.BlockSpec((dim + 1, tile_m_eff), lambda i, k: (0, k)),  # stored tile (streamed over k)
            ],
            out_specs=pl.BlockSpec((tile_n_eff, 1), lambda i, k: (i, 0)),
            scratch_shapes=[
                pltpu.VMEM((tile_n_eff, 1), jnp.float32),  # running min key
                pltpu.VMEM((tile_n_eff, 1), jnp.int32),    # running global argmin index
            ],
        ),
        compiler_params=pltpu.CompilerParams(
            dimension_semantics=("parallel", "arbitrary"),
            vmem_limit_bytes=32 * 1024 * 1024,
        ),
    )(xq_aug, xtT_aug)

    ind = best_idx[:N, 0]
    # final label gather done once in the wrapper (removes the in-kernel label stream)
    return jnp.take(y_train, ind)


def dcm_forward_ref(x, x_train, y_train):
    """Pure-JAX replica of the PyTorch forward (broadcast diff -> norm -> argmin -> gather)."""
    d = jnp.linalg.norm(x_train[None, :, :] - x[:, None, :], axis=-1)
    ind = jnp.argmin(d, axis=-1)
    return y_train[ind]


if __name__ == "__main__":
    cluster_num = 4
    key = jax.random.PRNGKey(0)
    (k_train, k_query, k_labels, k_train2, k_query2, k_labels2,
     k_train3, k_query3, k_labels3) = jax.random.split(key, 9)

    # Case 1: small single-tile problem ("fitted" state built deterministically in-script).
    N, M, dim = 16, 16, 32
    x_train = jax.random.normal(k_train, (M, dim), dtype=jnp.float32)
    y_train = jax.random.randint(k_labels, (M,), 0, cluster_num).astype(jnp.float32)
    x = jax.random.normal(k_query, (N, dim), dtype=jnp.float32)

    out = jax.block_until_ready(dcm_forward(x, x_train, y_train))
    ref = dcm_forward_ref(x, x_train, y_train)
    np.testing.assert_allclose(np.asarray(out), np.asarray(ref), rtol=0, atol=0)

    # Case 2: exercises multi-tile streaming over stored points (global-index carry),
    # query tiling, and ragged M that needs padding.
    N2, M2, dim2 = 32, 300, 16
    x_train2 = jax.random.normal(k_train2, (M2, dim2), dtype=jnp.float32)
    y_train2 = jax.random.randint(k_labels2, (M2,), 0, cluster_num).astype(jnp.float32)
    x2 = jax.random.normal(k_query2, (N2, dim2), dtype=jnp.float32)

    out2 = jax.block_until_ready(dcm_forward(x2, x_train2, y_train2, tile_n=8, tile_m=128))
    ref2 = dcm_forward_ref(x2, x_train2, y_train2)
    np.testing.assert_allclose(np.asarray(out2), np.asarray(ref2), rtol=0, atol=0)

    # Case 3: min_query_tiles=2 (v7x-style split of the parallel query axis).
    N3, M3, dim3 = 40, 64, 8
    x_train3 = jax.random.normal(k_train3, (M3, dim3), dtype=jnp.float32)
    y_train3 = jax.random.randint(k_labels3, (M3,), 0, cluster_num).astype(jnp.float32)
    x3 = jax.random.normal(k_query3, (N3, dim3), dtype=jnp.float32)

    out3 = jax.block_until_ready(dcm_forward(x3, x_train3, y_train3, min_query_tiles=2))
    ref3 = dcm_forward_ref(x3, x_train3, y_train3)
    np.testing.assert_allclose(np.asarray(out3), np.asarray(ref3), rtol=0, atol=0)

    print("KERNEL_OK")
</pallas_src>

<mosaic_0001>
module attributes {stable_mosaic.version = 11 : i64} {
  func.func @dcm_forward_kernel(%arg0: i32, %arg1: i32, %arg2: memref<16x33xf32, #tpu.memory_space<vmem>>, %arg3: memref<33x16xf32, #tpu.memory_space<vmem>>, %arg4: memref<16x1xi32, #tpu.memory_space<vmem>>, %arg5: memref<16x1xf32, #tpu.memory_space<vmem>>, %arg6: memref<16x1xi32, #tpu.memory_space<vmem>>) attributes {dimension_semantics = [#tpu.dimension_semantics<parallel>, #tpu.dimension_semantics<arbitrary>], iteration_bounds = array<i64: 1, 1>, scalar_prefetch = 0 : i64, scratch_operands = 2 : i64, tpu.core_type = #tpu.core_type<tc>, window_params = [{transform_indices = @transform_0, window_bounds = array<i64: 16, 33>}, {transform_indices = @transform_1, window_bounds = array<i64: 33, 16>}, {transform_indices = @transform_2, window_bounds = array<i64: 16, 1>}]} {
    %c0_i32 = arith.constant 0 : i32
    %0 = arith.cmpi eq, %arg1, %c0_i32 : i32
    %1 = arith.extui %0 : i1 to i32
    %c0_i32_0 = arith.constant 0 : i32
    %2 = arith.cmpi ne, %1, %c0_i32_0 : i32
    scf.if %2 {
      %cst_19 = arith.constant 0x7F800000 : f32
      %31 = vector.broadcast %cst_19 : f32 to vector<16x1xf32>
      %c0_20 = arith.constant 0 : index
      %c0_21 = arith.constant 0 : index
      %32 = vector.load %arg5[%c0_20, %c0_21] : memref<16x1xf32, #tpu.memory_space<vmem>>, vector<16x1xf32>
      tpu.vector_store %arg5[%c0_20, %c0_21], %31 {strides = array<i32>} : memref<16x1xf32, #tpu.memory_space<vmem>>, vector<16x1xf32>,
      %c0_i32_22 = arith.constant 0 : i32
      %33 = vector.broadcast %c0_i32_22 : i32 to vector<16x1xi32>
      %c0_23 = arith.constant 0 : index
      %c0_24 = arith.constant 0 : index
      %34 = vector.load %arg6[%c0_23, %c0_24] : memref<16x1xi32, #tpu.memory_space<vmem>>, vector<16x1xi32>
      tpu.vector_store %arg6[%c0_23, %c0_24], %33 {strides = array<i32>} : memref<16x1xi32, #tpu.memory_space<vmem>>, vector<16x1xi32>,
    } else {
    }
    %c0 = arith.constant 0 : index
    %c0_1 = arith.constant 0 : index
    %3 = vector.load %arg2[%c0, %c0_1] : memref<16x33xf32, #tpu.memory_space<vmem>>, vector<16x33xf32>
    %c0_2 = arith.constant 0 : index
    %c0_3 = arith.constant 0 : index
    %4 = vector.load %arg3[%c0_2, %c0_3] : memref<33x16xf32, #tpu.memory_space<vmem>>, vector<33x16xf32>
    %cst = arith.constant dense<0.000000e+00> : vector<16x16xf32>
    %5 = tpu.matmul %3, %4, %cst {dimension_numbers = #tpu.dot_dimension_numbers<[1], [0], [0], [1], [0, 0, 1, 1], [], []>} : vector<16x33xf32>, vector<33x16xf32>, vector<16x16xf32> -> vector<16x16xf32>
    %6 = tpu.iota {dimensions = array<i32: 1>} : vector<1x16xi32>
    %cst_4 = arith.constant dense<0x7F800000> : vector<16xf32>
    %7 = vector.multi_reduction <minimumf>, %5, %cst_4 [1] : vector<16x16xf32> to vector<16xf32>
    %8 = vector.shape_cast %7 : vector<16xf32> to vector<16x1xf32>
    %9 = vector.broadcast %8 : vector<16x1xf32> to vector<16x16xf32>
    %10 = arith.cmpf oeq, %5, %9 : vector<16x16xf32>
    %c16_i32 = arith.constant 16 : i32
    %11 = vector.shape_cast %6 : vector<1x16xi32> to vector<1x16xi32>
    %12 = vector.broadcast %11 : vector<1x16xi32> to vector<16x16xi32>
    %13 = vector.broadcast %c16_i32 : i32 to vector<16x16xi32>
    %14 = arith.select %10, %12, %13 : vector<16x16xi1>, vector<16x16xi32>
    %cst_5 = arith.constant dense<2147483647> : vector<16xi32>
    %15 = vector.multi_reduction <minsi>, %14, %cst_5 [1] : vector<16x16xi32> to vector<16xi32>
    %16 = vector.shape_cast %15 : vector<16xi32> to vector<16x1xi32>
    %c16_i32_6 = arith.constant 16 : i32
    %17 = arith.muli %arg1, %c16_i32_6 : i32
    %18 = vector.broadcast %17 : i32 to vector<16x1xi32>
    %19 = arith.addi %16, %18 : vector<16x1xi32>
    %c0_7 = arith.constant 0 : index
    %c0_8 = arith.constant 0 : index
    %20 = vector.load %arg5[%c0_7, %c0_8] : memref<16x1xf32, #tpu.memory_space<vmem>>, vector<16x1xf32>
    %21 = arith.cmpf olt, %8, %20 : vector<16x1xf32>
    %c0_9 = arith.constant 0 : index
    %c0_10 = arith.constant 0 : index
    %22 = vector.load %arg6[%c0_9, %c0_10] : memref<16x1xi32, #tpu.memory_space<vmem>>, vector<16x1xi32>
    %23 = arith.select %21, %19, %22 : vector<16x1xi1>, vector<16x1xi32>
    %c0_11 = arith.constant 0 : index
    %c0_12 = arith.constant 0 : index
    %24 = vector.load %arg6[%c0_11, %c0_12] : memref<16x1xi32, #tpu.memory_space<vmem>>, vector<16x1xi32>
    tpu.vector_store %arg6[%c0_11, %c0_12], %23 {strides = array<i32>} : memref<16x1xi32, #tpu.memory_space<vmem>>, vector<16x1xi32>,
    %c0_13 = arith.constant 0 : index
    %c0_14 = arith.constant 0 : index
    %25 = vector.load %arg5[%c0_13, %c0_14] : memref<16x1xf32, #tpu.memory_space<vmem>>, vector<16x1xf32>
    %26 = arith.select %21, %8, %25 : vector<16x1xi1>, vector<16x1xf32>
    %c0_15 = arith.constant 0 : index
    %c0_16 = arith.constant 0 : index
    %27 = vector.load %arg5[%c0_15, %c0_16] : memref<16x1xf32, #tpu.memory_space<vmem>>, vector<16x1xf32>
    tpu.vector_store %arg5[%c0_15, %c0_16], %26 {strides = array<i32>} : memref<16x1xf32, #tpu.memory_space<vmem>>, vector<16x1xf32>,
    %c0_i32_17 = arith.constant 0 : i32
    %28 = arith.cmpi eq, %arg1, %c0_i32_17 : i32
    %29 = arith.extui %28 : i1 to i32
    %c0_i32_18 = arith.constant 0 : i32
    %30 = arith.cmpi ne, %29, %c0_i32_18 : i32
    scf.if %30 {
      %c0_19 = arith.constant 0 : index
      %c0_20 = arith.constant 0 : index
      %31 = vector.load %arg6[%c0_19, %c0_20] : memref<16x1xi32, #tpu.memory_space<vmem>>, vector<16x1xi32>
      %c0_21 = arith.constant 0 : index
      %c0_22 = arith.constant 0 : index
      %32 = vector.load %arg4[%c0_21, %c0_22] : memref<16x1xi32, #tpu.memory_space<vmem>>, vector<16x1xi32>
      tpu.vector_store %arg4[%c0_21, %c0_22], %31 {strides = array<i32>} : memref<16x1xi32, #tpu.memory_space<vmem>>, vector<16x1xi32>,
    } else {
    }
    return
  }
  func.func @transform_0(%arg0: i32, %arg1: i32) -> (i32, i32) {
    %c0_i32 = arith.constant 0 : i32
    %c0_i32_0 = arith.constant 0 : i32
    return %arg0, %c0_i32 : i32, i32
  }
  func.func @transform_1(%arg0: i32, %arg1: i32) -> (i32, i32) {
    %c0_i32 = arith.constant 0 : i32
    %c0_i32_0 = arith.constant 0 : i32
    return %c0_i32, %arg1 : i32, i32
  }
  func.func @transform_2(%arg0: i32, %arg1: i32) -> (i32, i32) {
    %c0_i32 = arith.constant 0 : i32
    %c0_i32_0 = arith.constant 0 : i32
    return %arg0, %c0_i32 : i32, i32
  }
}

</mosaic_0001>

<llo_original>
// kernel: tpu_custom_call.1
$region0: #{tpu_custom_call.1}
  #allocation0 [shape = 'u32[]', space=smem, size = 0x4, offset = 0x4, fixed_abs, tag = 'smem constant byte address 0x4 - core index']
  #allocation1 [shape = 'u32[144,128]{1,0:T(1,128)}', space=vmem, size = 0x12000, scoped, tag = 'internal scratch']
  #allocation2 [shape = 'f32[16,1]{1,0:T(8,128)}', space=vmem, size = 0x2000, scoped, tag = 'scratch operand']
  #allocation3 [shape = 's32[16,1]{1,0:T(8,128)}', space=vmem, size = 0x2000, scoped, tag = 'scratch operand']
  %s0 = inlined_call_operand.vmem [shape: f32[16,33], index: 0, kind: input, shape index: {}]
  %s1 = inlined_call_operand.vmem [shape: f32[33,16], index: 1, kind: input, shape index: {}]
  %s2 = inlined_call_operand.vmem [shape: s32[16,1], index: 2, kind: output, shape index: {}]
  %s3 = sld [smem:[#allocation0]]
  $region26: #{tpu_custom_call.1} parent=0
    _
  %s5 = ssub.s32 1, %s3
  %s6 = scalar_select 0, %s5, %s3
  // Predicated region
  $region2: #{tpu_custom_call.1} parent=0 // pred_check
    _
  $region3: #{tpu_custom_call.1} parent=0 // pred_check_branch
    %8 = sbr.rel (0) target = $region5
  $region4: #{tpu_custom_call.1} parent=0 // pred_region
    _
  $region5: #{tpu_custom_call.1} parent=0 // pred_fallthru
    _
  // Predicated region
  $region6: #{tpu_custom_call.1} parent=0 // pred_check
    _
  $region7: #{tpu_custom_call.1} parent=0 // pred_check_branch
    %10 = sbr.rel (0) target = $region9
  $region8: #{tpu_custom_call.1} parent=0 // pred_region
    _
  $region9: #{tpu_custom_call.1} parent=0 // pred_fallthru
    _
  %p11 = scmp.eq.s32.totalorder 0, 0
  // Predicated region
  $region10: #{tpu_custom_call.1} parent=0 // pred_check
    %p12 = pneg %p11
  $region11: #{tpu_custom_call.1} parent=0 // pred_check_branch
    %14 = sbr.rel (%p12) target = $region13
  $region12: #{tpu_custom_call.1} parent=0 // pred_region
    %vm15 = vcmask 7168
    %16 = vst.msk [vmem:[#allocation2] sm:$0xff] %vm15, inf
    %17 = vst.msk [vmem:[#allocation2 + $0x8] sm:$0xff] %vm15, inf
    %18 = vst.msk [vmem:[#allocation3] sm:$0xff] %vm15, 0
    %19 = vst.msk [vmem:[#allocation3 + $0x8] sm:$0xff] %vm15, 0
  $region13: #{tpu_custom_call.1} parent=0 // pred_fallthru
    _
  %v20 = vld [vmem:[%s0] sm:$0xff]
  %v21 = vld [vmem:[%s0 + $0x8] sm:$0xff]
  %v22 = vld [vmem:[%s1] sm:$0xff]
  %v23 = vld [vmem:[%s1 + $0x8] sm:$0xff]
  %v24 = vld [vmem:[%s1 + $0x10] sm:$0xff]
  %v25 = vld [vmem:[%s1 + $0x18] sm:$0xff]
  %v26 = vld [vmem:[%s1 + $0x20] sm:$0x1]
  %vm27 = vcmask 269312
  %v29 = vsel %vm27, %v20, 0
  %v32 = vsel %vm27, %v21, 0
  %vm34 = vcmask 1040384
  %v36 = vsel %vm34, %v26, 0
  %38 = vmatprep.subr.mxu0 0.0
  %39 = vmatpush1.msra.mxu0 %v22
  %40 = vmatprep.subr.mxu0 0.0
  %41 = vmatpush1.msra.mxu0 %v23
  %42 = vmatprep.subr.mxu0 0.0
  %43 = vmatpush1.msra.mxu0 %v24
  %44 = vmatprep.subr.mxu0 0.0
  %45 = vmatpush1.msra.mxu0 %v25
  %46 = vmatprep.subr.mxu0 0.0
  %47 = vmatpush1.msra.mxu0 %v36
  %48 = vmatprep.subr.mxu0 0.0
  %49 = vmatpush1.msra.mxu0 0.0
  %50 = vmatprep.subr.mxu0 0.0
  %51 = vmatpush1.msra.mxu0 0.0
  %52 = vmatprep.subr.mxu0 0.0
  %53 = vmatpush1.msra.mxu0 0.0
  %54 = vmatprep.subr.mxu0 0.0
  %55 = vmatpush1.msra.mxu0 0.0
  %56 = vmatprep.subr.mxu0 0.0
  %57 = vmatpush1.msra.mxu0 0.0
  %58 = vmatprep.subr.mxu0 0.0
  %59 = vmatpush1.msra.mxu0 0.0
  %60 = vmatprep.subr.mxu0 0.0
  %61 = vmatpush1.msra.mxu0 0.0
  %62 = vmatprep.subr.mxu0 0.0
  %63 = vmatpush1.msra.mxu0 0.0
  %64 = vmatprep.subr.mxu0 0.0
  %65 = vmatpush1.msra.mxu0 0.0
  %66 = vmatprep.subr.mxu0 0.0
  %67 = vmatpush1.msra.mxu0 0.0
  %68 = vmatprep.subr.mxu0 0.0
  %69 = vmatpush1.msra.mxu0 0.0
  %70 = vmatprep.subr.mxu0 0.0
  %71 = vmatpush1.msra.mxu0 0.0
  %72 = vmatprep.subr.mxu0 0.0
  %73 = vmatpush1.msra.mxu0 0.0
  %74 = vmatprep.subr.mxu0 0.0
  %75 = vmatpush1.msra.mxu0 0.0
  %76 = vmatprep.subr.mxu0 0.0
  %77 = vmatpush1.msra.mxu0 0.0
  %78 = vmatprep.subr.mxu0 0.0
  %79 = vmatpush1.msra.mxu0 0.0
  %80 = vmatprep.subr.mxu0 0.0
  %81 = vmatpush1.msra.mxu0 0.0
  %82 = vmatprep.subr.mxu0 0.0
  %83 = vmatpush1.msra.mxu0 0.0
  %84 = vmatprep.subr.mxu0 0.0
  %85 = vmatpush1.msra.mxu0 0.0
  %86 = vmatprep.subr.mxu0 0.0
  %87 = vmatpush1.msra.mxu0 0.0
  %88 = vmatprep.subr.mxu0 0.0
  %89 = vmatpush1.msra.mxu0 0.0
  %90 = vmatprep.subr.mxu0 0.0
  %91 = vmatpush1.msra.mxu0 0.0
  %92 = vmatprep.subr.mxu0 0.0
  %93 = vmatpush1.msra.mxu0 0.0
  %94 = vmatprep.subr.mxu0 0.0
  %95 = vmatpush1.msra.mxu0 0.0
  %96 = vmatprep.subr.mxu0 0.0
  %97 = vmatpush1.msra.mxu0 0.0
  %98 = vmatprep.subr.mxu0 0.0
  %99 = vmatpush1.msra.mxu0 0.0
  %100 = vmatprep.subr.mxu0 0.0
  %101 = vmatpush1.msra.mxu0 0.0
  %102 = vmatprep.mubr.f32.mxu0 0.0
  %103 = vmatmul.mubr.f32.gmra.mrb[0].mxu0 %v29
  %v104 = vpop.f32.mrb[0].mxu0
  %v105 = vadd.f32 0.0, %v104
  %v106 = vpop.f32.mrb[0].mxu0
  %107 = vmatprep.mubr.f32.mxu0 0.0
  %108 = vmatmul.mubr.f32.gmra.mrb[0].mxu0 %v32
  %v109 = vpop.f32.mrb[0].mxu0
  %v110 = vadd.f32 0.0, %v109
  %v111 = vpop.f32.mrb[0].mxu0
  %112 = vdwg.mxu0
  %v113 = vlaneseq
  %v114 = vand.u32 %v113, 127
  %vm115 = vcmask 130048
  %v116 = vsel %vm115, %v105, inf
  %117 = vmin.xlane.f32.xlu0 %v116
  %v118 = vpop.xlane.xlu0 %117
  %v119 = vsel %vm115, %v110, inf
  %120 = vmin.xlane.f32.xlu0 %v119
  %v121 = vpop.xlane.xlu0 %120
  %vm122 = vcmp.eq.f32.partialorder %v105, %v118
  %vm123 = vcmp.eq.f32.partialorder %v110, %v121
  %v124 = vsel %vm122, %v114, 16
  %v125 = vsel %vm123, %v114, 16
  %v126 = vsel %vm115, %v124, 2147483647
  %v127 = vand.u32 %v126, 65535
  %v128 = vshra.s32 %v126, 16
  %v129 = vcvt.s32.f32 %v127
  %v130 = vcvt.s32.f32 %v128
  %131 = vmin.xlane.f32.xlu0 %v130
  %v132 = vpop.xlane.xlu0 %131
  %vm133 = vcmp.eq.f32.partialorder %v130, %v132
  %v134 = vsel %vm133, %v129, inf
  %135 = vmin.xlane.f32.xlu0 %v134
  %v136 = vpop.xlane.xlu0 %135
  %v137 = vcvt.f32.s32 %v136
  %v138 = vcvt.f32.s32 %v132
  %v139 = vshll.u32 %v138, 16
  %v140 = vadd.s32 %v139, %v137
  %v141 = vsel %vm115, %v125, 2147483647
  %v142 = vand.u32 %v141, 65535
  %v143 = vshra.s32 %v141, 16
  %v144 = vcvt.s32.f32 %v142
  %v145 = vcvt.s32.f32 %v143
  %146 = vmin.xlane.f32.xlu0 %v145
  %v147 = vpop.xlane.xlu0 %146
  %vm148 = vcmp.eq.f32.partialorder %v145, %v147
  %v149 = vsel %vm148, %v144, inf
  %150 = vmin.xlane.f32.xlu0 %v149
  %v151 = vpop.xlane.xlu0 %150
  %v152 = vcvt.f32.s32 %v151
  %v153 = vcvt.f32.s32 %v147
  %v154 = vshll.u32 %v153, 16
  %v155 = vadd.s32 %v154, %v152
  %s156 = smul.u32 0, 16
  %v157 = vstv %s156
  %v158 = vadd.s32 %v140, %v157
  %v159 = vadd.s32 %v155, %v157
  %v160 = vld [vmem:[#allocation2] sm:$0xff]
  %v161 = vld [vmem:[#allocation2 + $0x8] sm:$0xff]
  %vm162 = vcmp.lt.f32.partialorder %v118, %v160
  %vm163 = vcmp.lt.f32.partialorder %v121, %v161
  %v164 = vld [vmem:[#allocation3] sm:$0xff]
  %v165 = vld [vmem:[#allocation3 + $0x8] sm:$0xff]
  %v166 = vsel %vm162, %v158, %v164
  %v167 = vsel %vm163, %v159, %v165
  %vm168 = vcmask 7168
  %169 = vst.msk [vmem:[#allocation3] sm:$0xff] %vm168, %v166
  %170 = vst.msk [vmem:[#allocation3 + $0x8] sm:$0xff] %vm168, %v167
  %v171 = vld [vmem:[#allocation2] sm:$0xff]
  %v172 = vld [vmem:[#allocation2 + $0x8] sm:$0xff]
  %v173 = vsel %vm162, %v118, %v171
  %v174 = vsel %vm163, %v121, %v172
  %175 = vst.msk [vmem:[#allocation2] sm:$0xff] %vm168, %v173
  %176 = vst.msk [vmem:[#allocation2 + $0x8] sm:$0xff] %vm168, %v174
  // Predicated region
  $region14: #{tpu_custom_call.1} parent=0 // pred_check
    %p177 = pneg %p11
  $region15: #{tpu_custom_call.1} parent=0 // pred_check_branch
    %179 = sbr.rel (%p177) target = $region17
  $region16: #{tpu_custom_call.1} parent=0 // pred_region
    %v180 = vld [vmem:[#allocation3] sm:$0xff]
    %v181 = vld [vmem:[#allocation3 + $0x8] sm:$0xff]
    %182 = vst.msk [vmem:[%s2] sm:$0xff] %vm168, %v180
    %183 = vst.msk [vmem:[%s2 + $0x8] sm:$0xff] %vm168, %v181
  $region17: #{tpu_custom_call.1} parent=0 // pred_fallthru
    _
  // Predicated region
  $region18: #{tpu_custom_call.1} parent=0 // pred_check
    _
  $region19: #{tpu_custom_call.1} parent=0 // pred_check_branch
    %185 = sbr.rel (0) target = $region21
  $region20: #{tpu_custom_call.1} parent=0 // pred_region
    _
  $region21: #{tpu_custom_call.1} parent=0 // pred_fallthru
    _
  // Predicated region
  $region22: #{tpu_custom_call.1} parent=0 // pred_check
    _
  $region23: #{tpu_custom_call.1} parent=0 // pred_check_branch
    %187 = sbr.rel (0) target = $region25
  $region24: #{tpu_custom_call.1} parent=0 // pred_region
    _
  $region25: #{tpu_custom_call.1} parent=0 // pred_fallthru
    _

</llo_original>
